<compile_context>
chip_gen: v5e
topology: v5e:2x2
jax: 0.10.0
libtpu: 0.0.40
codegen_flags: <defaults>
</compile_context>

<pallas_src>
import math

import numpy as np

import jax
import jax.numpy as jnp
from jax import lax
from jax.experimental import pallas as pl
from jax.experimental.pallas import tpu as pltpu

# ---------------- synthetic config ----------------
N_EMBD = 32
N_HEAD = 4
N_QUERY_GROUPS = 4                       # == n_head -> plain MHA, q_per_kv = 1
HEAD_SIZE = N_EMBD // N_HEAD             # 8
ROPE_N_ELEM = HEAD_SIZE                  # rotary_percentage = 1.0
HALF = ROPE_N_ELEM // 2                  # 4
HALF_ALL = N_HEAD * HALF                 # 16 (all heads' half-dims)
INTERMEDIATE = 4 * N_EMBD                # 128
NORM_EPS = 1e-5
QKV_DIM = (N_HEAD + 2 * N_QUERY_GROUPS) * HEAD_SIZE   # 96
SCALE = 1.0 / math.sqrt(HEAD_SIZE)
SQRT_2_OVER_PI = math.sqrt(2.0 / math.pi)
NEG_INF = -1e30

# Set to jnp.bfloat16 on v6e/v7x for ~2-3x MXU throughput (halves weight DMA);
# kept f32 here so the 1e-3 tolerance check against the f32 reference is exact.
# LN / RoPE / softmax / GELU and the -1e30 masked scores always stay f32.
MXU_DTYPE = jnp.float32

B = 2
T = 8


# ---------------- kernel ----------------
def block_kernel(x_ref, cos_ref, sin_ref, amask_ref, qmask_ref, vmask_ref,
                 g1_ref, b1_ref, g2_ref, b2_ref,
                 wqkv_ref, bqkv_ref, wproj_ref, bproj_ref,
                 wfc_ref, bfc_ref, wmp_ref, bmp_ref,
                 out_ref):
    x = x_ref[...]                   # (BT, C) f32
    cosr = cos_ref[...]              # (BT, HALF_ALL) per-row half-cos, head-tiled
    sinr = sin_ref[...]              # (BT, HALF_ALL)

    def mm(a, b):                    # MXU matmul, f32 accumulation
        return jnp.dot(a.astype(MXU_DTYPE), b.astype(MXU_DTYPE),
                       preferred_element_type=jnp.float32)

    def layernorm(u, g, b):
        mu = jnp.mean(u, axis=-1, keepdims=True)
        var = jnp.mean((u - mu) ** 2, axis=-1, keepdims=True)   # biased, like torch
        return (u - mu) * lax.rsqrt(var + NORM_EPS) * g + b

    # ---- norm_1 + fused QKV projection (columns pre-permuted, q pre-scaled) --
    n1 = layernorm(x, g1_ref[...], b1_ref[...])
    qkv = mm(n1, wqkv_ref[...]) + bqkv_ref[...]

    # slab layout: [ qA | qB | kA | kB | v ]  (A/B = rope halves, head-major)
    qA = qkv[:, 0:HALF_ALL]
    qB = qkv[:, HALF_ALL:2 * HALF_ALL]
    kA = qkv[:, 2 * HALF_ALL:3 * HALF_ALL]
    kB = qkv[:, 3 * HALF_ALL:4 * HALF_ALL]
    v_all = qkv[:, 4 * HALF_ALL:4 * HALF_ALL + N_EMBD]          # (BT, C)

    # ---- RoPE, pure elementwise (uses cos[:, :HALF] == cos[:, HALF:]) ----
    rqA = qA * cosr - qB * sinr
    rqB = qB * cosr + qA * sinr
    rkA = kA * cosr - kB * sinr
    rkB = kB * cosr + kA * sinr
    rq = jnp.concatenate([rqA, rqB], axis=1)                    # (BT, 2*HALF_ALL)
    rk = jnp.concatenate([rkA, rkB], axis=1)                    # (BT, 2*HALF_ALL)

    rows, c = x.shape

    # ---- all heads in ONE score matmul ----
    # q_big: head-h row-block keeps only head-h lanes -> block-diagonal scores
    q_big = jnp.concatenate([rq] * N_HEAD, axis=0) * qmask_ref[...]   # (H*BT, 32)
    dn = (((1,), (1,)), ((), ()))    # contract minor dims (rk used untransposed)
    s = lax.dot_general(q_big.astype(MXU_DTYPE), rk.astype(MXU_DTYPE), dn,
                        preferred_element_type=jnp.float32)
    s = s + amask_ref[...]                                      # causal + batch mask
    s = s - jnp.max(s, axis=-1, keepdims=True)
    p = jnp.exp(s)
    p = p * pl.reciprocal(jnp.sum(p, axis=-1, keepdims=True), approx=True)

    # ---- ONE P@V, lane-mask + 3 adds to reassemble heads, ONE y@wproj ----
    ov = mm(p, v_all) * vmask_ref[...]                          # (H*BT, C)
    y = ov[0:rows, :]
    for h in range(1, N_HEAD):
        y = y + ov[h * rows:(h + 1) * rows, :]
    h_attn = mm(y, wproj_ref[...]) + bproj_ref[...]

    # ---- norm_2 + MLP (parallel residual) ----
    n2 = layernorm(x, g2_ref[...], b2_ref[...])
    fc = mm(n2, wfc_ref[...]) + bfc_ref[...]
    gelu = 0.5 * fc * (1.0 + jnp.tanh(SQRT_2_OVER_PI * (fc + 0.044715 * fc * fc * fc)))
    mlp = mm(gelu, wmp_ref[...]) + bmp_ref[...]

    out_ref[...] = mlp + h_attn + x


# ---------------- one-time host-side prep ----------------
def _qkv_permutation():
    # original column = g*(3*hs) + which*hs + d  (which: 0=q,1=k,2=v; q_per_kv=1)
    per_group = 3 * HEAD_SIZE
    perm = []
    for which, off in ((0, 0), (0, HALF), (1, 0), (1, HALF)):   # qA, qB, kA, kB
        for h in range(N_HEAD):
            for dd in range(HALF):
                perm.append(h * per_group + which * HEAD_SIZE + off + dd)
    for h in range(N_HEAD):                                      # v (head-major)
        for d in range(HEAD_SIZE):
            perm.append(h * per_group + 2 * HEAD_SIZE + d)
    return np.asarray(perm, dtype=np.int32)


def build_block_constants(params, cos, sin, bsz, t):
    """One-time prep: permuted/scaled weights, rope tables, masks (device arrays)."""
    bt = bsz * t
    perm = _qkv_permutation()

    wqkv_p = np.asarray(params["wqkv"])[:, perm].copy()
    bqkv_p = np.asarray(params["bqkv"])[:, perm].copy()
    # fold 1/sqrt(head_size) into the q slabs (RoPE is linear, so this commutes)
    wqkv_p[:, :2 * HALF_ALL] *= SCALE
    bqkv_p[:, :2 * HALF_ALL] *= SCALE

    cos_np = np.asarray(cos, np.float32)
    sin_np = np.asarray(sin, np.float32)
    # lit-gpt rope cache property required by the half-slab RoPE formulation
    assert np.allclose(cos_np[:, :HALF], cos_np[:, HALF:])
    assert np.allclose(sin_np[:, :HALF], sin_np[:, HALF:])
    cos_bt = np.tile(cos_np[:, :HALF], (bsz, N_HEAD))            # (BT, HALF_ALL)
    sin_bt = np.tile(sin_np[:, :HALF], (bsz, N_HEAD))

    # additive causal + same-batch mask over the flattened (b*t) row axis,
    # tiled over heads to match the row-stacked (H*BT, BT) score matrix
    bidx = np.arange(bt) // t
    tidx = np.arange(bt) % t
    allowed = (bidx[:, None] == bidx[None, :]) & (tidx[None, :] <= tidx[:, None])
    amask = np.where(allowed, 0.0, NEG_INF).astype(np.float32)
    amask_big = np.tile(amask, (N_HEAD, 1))                      # (H*BT, BT)

    # lane masks: head-h row block keeps only head-h query lanes / value lanes
    qmask = np.zeros((N_HEAD * bt, 2 * HALF_ALL), np.float32)
    vmask = np.zeros((N_HEAD * bt, N_EMBD), np.float32)
    for h in range(N_HEAD):
        r = slice(h * bt, (h + 1) * bt)
        qmask[r, h * HALF:(h + 1) * HALF] = 1.0
        qmask[r, HALF_ALL + h * HALF:HALF_ALL + (h + 1) * HALF] = 1.0
        vmask[r, h * HEAD_SIZE:(h + 1) * HEAD_SIZE] = 1.0

    return (jnp.asarray(cos_bt), jnp.asarray(sin_bt), jnp.asarray(amask_big),
            jnp.asarray(qmask), jnp.asarray(vmask),
            params["g1"], params["b1"], params["g2"], params["b2"],
            jnp.asarray(wqkv_p), jnp.asarray(bqkv_p),
            params["wproj"], params["bproj"],
            params["wfc"], params["bfc"], params["wmp"], params["bmp"])


# ---------------- jitted forward ----------------
@jax.jit
def block_forward(x, consts):
    bsz, t, c = x.shape
    bt = bsz * t
    xf = x.reshape(bt, c)
    inputs = (xf,) + tuple(consts)

    def fullspec(a):
        nd = a.ndim
        return pl.BlockSpec(a.shape, lambda i, _nd=nd: (0,) * _nd)

    in_specs = [fullspec(a) for a in inputs]
    out_spec = pl.BlockSpec((bt, c), lambda i: (0, 0))

    hbt = N_HEAD * bt
    flops = (2 * bt * c * QKV_DIM                      # qkv
             + 2 * hbt * (2 * HALF_ALL) * bt           # scores (all heads)
             + 2 * hbt * bt * c                        # P @ V
             + 2 * bt * c * c                          # proj
             + 2 * bt * c * INTERMEDIATE               # fc
             + 2 * bt * INTERMEDIATE * c)              # mp
    transcendentals = hbt * bt + bt * INTERMEDIATE
    bytes_accessed = 4 * (sum(int(np.prod(a.shape)) for a in inputs) + bt * c)

    out = pl.pallas_call(
        block_kernel,
        out_shape=jax.ShapeDtypeStruct((bt, c), jnp.float32),
        grid_spec=pltpu.PrefetchScalarGridSpec(
            num_scalar_prefetch=0,
            grid=(1,),                       # single step: whole problem in VMEM
            in_specs=in_specs,
            out_specs=out_spec,
        ),
        compiler_params=pltpu.CompilerParams(
            dimension_semantics=("arbitrary",)),
        cost_estimate=pl.CostEstimate(
            flops=int(flops),
            transcendentals=int(transcendentals),
            bytes_accessed=int(bytes_accessed)),
    )(*inputs)
    return out.reshape(bsz, t, c)


# ---------------- pure-JAX reference (mirrors the PyTorch module) ----------------
def block_reference(x, cos, sin, p):
    def ln(v, g, b):
        mu = v.mean(-1, keepdims=True)
        var = ((v - mu) ** 2).mean(-1, keepdims=True)
        return (v - mu) / jnp.sqrt(var + NORM_EPS) * g + b

    bsz, t, c = x.shape
    n1 = ln(x, p["g1"][0], p["b1"][0])
    qkv = n1 @ p["wqkv"] + p["bqkv"][0]
    qkv = qkv.reshape(bsz, t, N_QUERY_GROUPS, 3, HEAD_SIZE).transpose(0, 2, 3, 1, 4)
    q, k, v = qkv[:, :, 0], qkv[:, :, 1], qkv[:, :, 2]        # (B, nh, T, hs)

    def rope(u):
        u1 = u[..., : ROPE_N_ELEM // 2]
        u2 = u[..., ROPE_N_ELEM // 2:]
        return u * cos + jnp.concatenate([-u2, u1], -1) * sin

    q, k = rope(q), rope(k)
    s = jnp.einsum("bhtd,bhsd->bhts", q, k) * SCALE
    mask = jnp.tril(jnp.ones((t, t), bool))
    s = jnp.where(mask, s, -jnp.inf)
    att = jax.nn.softmax(s, axis=-1)
    y = jnp.einsum("bhts,bhsd->bhtd", att, v)
    y = y.transpose(0, 2, 1, 3).reshape(bsz, t, c)
    h = y @ p["wproj"] + p["bproj"][0]

    n2 = ln(x, p["g2"][0], p["b2"][0])
    fc = n2 @ p["wfc"] + p["bfc"][0]
    gelu = 0.5 * fc * (1.0 + jnp.tanh(SQRT_2_OVER_PI * (fc + 0.044715 * fc ** 3)))
    mlp = gelu @ p["wmp"] + p["bmp"][0]
    return mlp + h + x


# ---------------- setup ----------------
def make_params(key):
    ks = jax.random.split(key, 8)
    std = 0.02
    return {
        "g1": jnp.ones((1, N_EMBD), jnp.float32),
        "b1": jnp.zeros((1, N_EMBD), jnp.float32),
        "g2": jnp.ones((1, N_EMBD), jnp.float32),
        "b2": jnp.zeros((1, N_EMBD), jnp.float32),
        "wqkv": std * jax.random.normal(ks[0], (N_EMBD, QKV_DIM), jnp.float32),
        "bqkv": std * jax.random.normal(ks[1], (1, QKV_DIM), jnp.float32),
        "wproj": std * jax.random.normal(ks[2], (N_EMBD, N_EMBD), jnp.float32),
        "bproj": std * jax.random.normal(ks[3], (1, N_EMBD), jnp.float32),
        "wfc": std * jax.random.normal(ks[4], (N_EMBD, INTERMEDIATE), jnp.float32),
        "bfc": std * jax.random.normal(ks[5], (1, INTERMEDIATE), jnp.float32),
        "wmp": std * jax.random.normal(ks[6], (INTERMEDIATE, N_EMBD), jnp.float32),
        "bmp": std * jax.random.normal(ks[7], (1, N_EMBD), jnp.float32),
    }


def make_rope_cache(seq_len):
    # mirrors lit_gpt.build_rope_cache (=> cos[:, :HALF] == cos[:, HALF:])
    theta = 1.0 / (10000.0 ** (jnp.arange(0, ROPE_N_ELEM, 2, dtype=jnp.float32) / ROPE_N_ELEM))
    seq = jnp.arange(seq_len, dtype=jnp.float32)
    idx_theta = jnp.outer(seq, theta)
    idx_theta = jnp.concatenate([idx_theta, idx_theta], axis=-1)   # .repeat(1, 2)
    return jnp.cos(idx_theta), jnp.sin(idx_theta)


# TODO(synk): KVCache / input_pos decode path and the optional attention-mask
# argument are not implemented (module exercised with mask=None, input_pos=None).

if __name__ == "__main__":
    key = jax.random.PRNGKey(0)
    kx, kp = jax.random.split(key)
    x = jax.random.normal(kx, (B, T, N_EMBD), jnp.float32)
    cos, sin = make_rope_cache(T)
    params = make_params(kp)

    consts = build_block_constants(params, cos, sin, B, T)   # one-time prep
    out = block_forward(x, consts)
    out = jax.block_until_ready(out)

    ref = block_reference(x, cos, sin, params)
    assert out.shape == (B, T, N_EMBD)
    err = float(jnp.max(jnp.abs(out - ref)))
    assert jnp.allclose(out, ref, atol=1e-3, rtol=1e-3), err

    print("KERNEL_OK")
</pallas_src>

<mosaic_0001>
module attributes {stable_mosaic.version = 11 : i64} {
  func.func @block_kernel(%arg0: i32, %arg1: memref<16x32xf32, #tpu.memory_space<vmem>>, %arg2: memref<16x16xf32, #tpu.memory_space<vmem>>, %arg3: memref<16x16xf32, #tpu.memory_space<vmem>>, %arg4: memref<64x16xf32, #tpu.memory_space<vmem>>, %arg5: memref<64x32xf32, #tpu.memory_space<vmem>>, %arg6: memref<64x32xf32, #tpu.memory_space<vmem>>, %arg7: memref<1x32xf32, #tpu.memory_space<vmem>>, %arg8: memref<1x32xf32, #tpu.memory_space<vmem>>, %arg9: memref<1x32xf32, #tpu.memory_space<vmem>>, %arg10: memref<1x32xf32, #tpu.memory_space<vmem>>, %arg11: memref<32x96xf32, #tpu.memory_space<vmem>>, %arg12: memref<1x96xf32, #tpu.memory_space<vmem>>, %arg13: memref<32x32xf32, #tpu.memory_space<vmem>>, %arg14: memref<1x32xf32, #tpu.memory_space<vmem>>, %arg15: memref<32x128xf32, #tpu.memory_space<vmem>>, %arg16: memref<1x128xf32, #tpu.memory_space<vmem>>, %arg17: memref<128x32xf32, #tpu.memory_space<vmem>>, %arg18: memref<1x32xf32, #tpu.memory_space<vmem>>, %arg19: memref<16x32xf32, #tpu.memory_space<vmem>>) attributes {dimension_semantics = [#tpu.dimension_semantics<arbitrary>], iteration_bounds = array<i64: 1>, scalar_prefetch = 0 : i64, scratch_operands = 0 : i64, tpu.core_type = #tpu.core_type<tc>, window_params = [{pipeline_mode = #tpu.pipeline_mode<synchronous>, transform_indices = @transform_0, window_bounds = array<i64: 16, 32>}, {pipeline_mode = #tpu.pipeline_mode<synchronous>, transform_indices = @transform_1, window_bounds = array<i64: 16, 16>}, {pipeline_mode = #tpu.pipeline_mode<synchronous>, transform_indices = @transform_2, window_bounds = array<i64: 16, 16>}, {pipeline_mode = #tpu.pipeline_mode<synchronous>, transform_indices = @transform_3, window_bounds = array<i64: 64, 16>}, {pipeline_mode = #tpu.pipeline_mode<synchronous>, transform_indices = @transform_4, window_bounds = array<i64: 64, 32>}, {pipeline_mode = #tpu.pipeline_mode<synchronous>, transform_indices = @transform_5, window_bounds = array<i64: 64, 32>}, {pipeline_mode = #tpu.pipeline_mode<synchronous>, transform_indices = @transform_6, window_bounds = array<i64: 1, 32>}, {pipeline_mode = #tpu.pipeline_mode<synchronous>, transform_indices = @transform_7, window_bounds = array<i64: 1, 32>}, {pipeline_mode = #tpu.pipeline_mode<synchronous>, transform_indices = @transform_8, window_bounds = array<i64: 1, 32>}, {pipeline_mode = #tpu.pipeline_mode<synchronous>, transform_indices = @transform_9, window_bounds = array<i64: 1, 32>}, {pipeline_mode = #tpu.pipeline_mode<synchronous>, transform_indices = @transform_10, window_bounds = array<i64: 32, 96>}, {pipeline_mode = #tpu.pipeline_mode<synchronous>, transform_indices = @transform_11, window_bounds = array<i64: 1, 96>}, {pipeline_mode = #tpu.pipeline_mode<synchronous>, transform_indices = @transform_12, window_bounds = array<i64: 32, 32>}, {pipeline_mode = #tpu.pipeline_mode<synchronous>, transform_indices = @transform_13, window_bounds = array<i64: 1, 32>}, {pipeline_mode = #tpu.pipeline_mode<synchronous>, transform_indices = @transform_14, window_bounds = array<i64: 32, 128>}, {pipeline_mode = #tpu.pipeline_mode<synchronous>, transform_indices = @transform_15, window_bounds = array<i64: 1, 128>}, {pipeline_mode = #tpu.pipeline_mode<synchronous>, transform_indices = @transform_16, window_bounds = array<i64: 128, 32>}, {pipeline_mode = #tpu.pipeline_mode<synchronous>, transform_indices = @transform_17, window_bounds = array<i64: 1, 32>}, {pipeline_mode = #tpu.pipeline_mode<synchronous>, transform_indices = @transform_18, window_bounds = array<i64: 16, 32>}]} {
    %c0 = arith.constant 0 : index
    %c0_0 = arith.constant 0 : index
    %0 = vector.load %arg1[%c0, %c0_0] : memref<16x32xf32, #tpu.memory_space<vmem>>, vector<16x32xf32>
    %c0_1 = arith.constant 0 : index
    %c0_2 = arith.constant 0 : index
    %1 = vector.load %arg2[%c0_1, %c0_2] : memref<16x16xf32, #tpu.memory_space<vmem>>, vector<16x16xf32>
    %c0_3 = arith.constant 0 : index
    %c0_4 = arith.constant 0 : index
    %2 = vector.load %arg3[%c0_3, %c0_4] : memref<16x16xf32, #tpu.memory_space<vmem>>, vector<16x16xf32>
    %c0_5 = arith.constant 0 : index
    %c0_6 = arith.constant 0 : index
    %3 = vector.load %arg7[%c0_5, %c0_6] : memref<1x32xf32, #tpu.memory_space<vmem>>, vector<1x32xf32>
    %c0_7 = arith.constant 0 : index
    %c0_8 = arith.constant 0 : index
    %4 = vector.load %arg8[%c0_7, %c0_8] : memref<1x32xf32, #tpu.memory_space<vmem>>, vector<1x32xf32>
    %cst = arith.constant dense<0.000000e+00> : vector<16xf32>
    %5 = vector.multi_reduction <add>, %0, %cst [1] : vector<16x32xf32> to vector<16xf32>
    %6 = vector.shape_cast %5 : vector<16xf32> to vector<16x1xf32>
    %cst_9 = arith.constant 3.200000e+01 : f32
    %7 = vector.broadcast %cst_9 : f32 to vector<16x1xf32>
    %8 = arith.divf %6, %7 : vector<16x1xf32>
    %9 = vector.broadcast %8 : vector<16x1xf32> to vector<16x32xf32>
    %10 = arith.subf %0, %9 : vector<16x32xf32>
    %11 = arith.mulf %10, %10 : vector<16x32xf32>
    %cst_10 = arith.constant dense<0.000000e+00> : vector<16xf32>
    %12 = vector.multi_reduction <add>, %11, %cst_10 [1] : vector<16x32xf32> to vector<16xf32>
    %13 = vector.shape_cast %12 : vector<16xf32> to vector<16x1xf32>
    %cst_11 = arith.constant 3.200000e+01 : f32
    %14 = vector.broadcast %cst_11 : f32 to vector<16x1xf32>
    %15 = arith.divf %13, %14 : vector<16x1xf32>
    %16 = vector.broadcast %8 : vector<16x1xf32> to vector<16x32xf32>
    %17 = arith.subf %0, %16 : vector<16x32xf32>
    %cst_12 = arith.constant 9.99999974E-6 : f32
    %18 = vector.broadcast %cst_12 : f32 to vector<16x1xf32>
    %19 = arith.addf %15, %18 : vector<16x1xf32>
    %20 = math.rsqrt %19 : vector<16x1xf32>
    %21 = vector.broadcast %20 : vector<16x1xf32> to vector<16x32xf32>
    %22 = arith.mulf %17, %21 : vector<16x32xf32>
    %23 = vector.broadcast %3 : vector<1x32xf32> to vector<16x32xf32>
    %24 = arith.mulf %22, %23 : vector<16x32xf32>
    %25 = vector.broadcast %4 : vector<1x32xf32> to vector<16x32xf32>
    %26 = arith.addf %24, %25 : vector<16x32xf32>
    %c0_13 = arith.constant 0 : index
    %c0_14 = arith.constant 0 : index
    %27 = vector.load %arg11[%c0_13, %c0_14] : memref<32x96xf32, #tpu.memory_space<vmem>>, vector<32x96xf32>
    %cst_15 = arith.constant dense<0.000000e+00> : vector<16x96xf32>
    %28 = tpu.matmul %26, %27, %cst_15 {dimension_numbers = #tpu.dot_dimension_numbers<[1], [0], [0], [1], [0, 0, 1, 1], [], []>} : vector<16x32xf32>, vector<32x96xf32>, vector<16x96xf32> -> vector<16x96xf32>
    %c0_16 = arith.constant 0 : index
    %c0_17 = arith.constant 0 : index
    %29 = vector.load %arg12[%c0_16, %c0_17] : memref<1x96xf32, #tpu.memory_space<vmem>>, vector<1x96xf32>
    %30 = vector.broadcast %29 : vector<1x96xf32> to vector<16x96xf32>
    %31 = arith.addf %28, %30 : vector<16x96xf32>
    %32 = vector.extract_strided_slice %31 {offsets = [0, 0], sizes = [16, 16], strides = [1, 1]} : vector<16x96xf32> to vector<16x16xf32>
    %33 = vector.extract_strided_slice %31 {offsets = [0, 16], sizes = [16, 16], strides = [1, 1]} : vector<16x96xf32> to vector<16x16xf32>
    %34 = vector.extract_strided_slice %31 {offsets = [0, 32], sizes = [16, 16], strides = [1, 1]} : vector<16x96xf32> to vector<16x16xf32>
    %35 = vector.extract_strided_slice %31 {offsets = [0, 48], sizes = [16, 16], strides = [1, 1]} : vector<16x96xf32> to vector<16x16xf32>
    %36 = vector.extract_strided_slice %31 {offsets = [0, 64], sizes = [16, 32], strides = [1, 1]} : vector<16x96xf32> to vector<16x32xf32>
    %37 = arith.mulf %32, %1 : vector<16x16xf32>
    %38 = arith.mulf %33, %2 : vector<16x16xf32>
    %39 = arith.subf %37, %38 : vector<16x16xf32>
    %40 = arith.mulf %33, %1 : vector<16x16xf32>
    %41 = arith.mulf %32, %2 : vector<16x16xf32>
    %42 = arith.addf %40, %41 : vector<16x16xf32>
    %43 = arith.mulf %34, %1 : vector<16x16xf32>
    %44 = arith.mulf %35, %2 : vector<16x16xf32>
    %45 = arith.subf %43, %44 : vector<16x16xf32>
    %46 = arith.mulf %35, %1 : vector<16x16xf32>
    %47 = arith.mulf %34, %2 : vector<16x16xf32>
    %48 = arith.addf %46, %47 : vector<16x16xf32>
    %49 = tpu.concatenate %39, %42 in 1 : vector<16x16xf32>, vector<16x16xf32> -> vector<16x32xf32>
    %50 = tpu.concatenate %45, %48 in 1 : vector<16x16xf32>, vector<16x16xf32> -> vector<16x32xf32>
    %51 = tpu.concatenate %49, %49, %49, %49 in 0 : vector<16x32xf32>, vector<16x32xf32>, vector<16x32xf32>, vector<16x32xf32> -> vector<64x32xf32>
    %c0_18 = arith.constant 0 : index
    %c0_19 = arith.constant 0 : index
    %52 = vector.load %arg5[%c0_18, %c0_19] : memref<64x32xf32, #tpu.memory_space<vmem>>, vector<64x32xf32>
    %53 = arith.mulf %51, %52 : vector<64x32xf32>
    %cst_20 = arith.constant dense<0.000000e+00> : vector<64x16xf32>
    %54 = tpu.matmul %53, %50, %cst_20 {dimension_numbers = #tpu.dot_dimension_numbers<[1], [1], [0], [0], [0, 0, 1, 0], [], []>} : vector<64x32xf32>, vector<16x32xf32>, vector<64x16xf32> -> vector<64x16xf32>
    %c0_21 = arith.constant 0 : index
    %c0_22 = arith.constant 0 : index
    %55 = vector.load %arg4[%c0_21, %c0_22] : memref<64x16xf32, #tpu.memory_space<vmem>>, vector<64x16xf32>
    %56 = arith.addf %54, %55 : vector<64x16xf32>
    %cst_23 = arith.constant dense<0xFF800000> : vector<64xf32>
    %57 = vector.multi_reduction <maximumf>, %56, %cst_23 [1] : vector<64x16xf32> to vector<64xf32>
    %58 = vector.shape_cast %57 : vector<64xf32> to vector<64x1xf32>
    %59 = vector.broadcast %58 : vector<64x1xf32> to vector<64x16xf32>
    %60 = arith.subf %56, %59 : vector<64x16xf32>
    %61 = math.exp %60 : vector<64x16xf32>
    %cst_24 = arith.constant dense<0.000000e+00> : vector<64xf32>
    %62 = vector.multi_reduction <add>, %61, %cst_24 [1] : vector<64x16xf32> to vector<64xf32>
    %63 = vector.shape_cast %62 : vector<64xf32> to vector<64x1xf32>
    %64 = tpu.reciprocal %63 {approx = true} : vector<64x1xf32> -> vector<64x1xf32>
    %65 = vector.broadcast %64 : vector<64x1xf32> to vector<64x16xf32>
    %66 = arith.mulf %61, %65 : vector<64x16xf32>
    %cst_25 = arith.constant dense<0.000000e+00> : vector<64x32xf32>
    %67 = tpu.matmul %66, %36, %cst_25 {dimension_numbers = #tpu.dot_dimension_numbers<[1], [0], [0], [1], [0, 0, 1, 1], [], []>} : vector<64x16xf32>, vector<16x32xf32>, vector<64x32xf32> -> vector<64x32xf32>
    %c0_26 = arith.constant 0 : index
    %c0_27 = arith.constant 0 : index
    %68 = vector.load %arg6[%c0_26, %c0_27] : memref<64x32xf32, #tpu.memory_space<vmem>>, vector<64x32xf32>
    %69 = arith.mulf %67, %68 : vector<64x32xf32>
    %70 = vector.extract_strided_slice %69 {offsets = [0, 0], sizes = [16, 32], strides = [1, 1]} : vector<64x32xf32> to vector<16x32xf32>
    %71 = vector.extract_strided_slice %69 {offsets = [16, 0], sizes = [16, 32], strides = [1, 1]} : vector<64x32xf32> to vector<16x32xf32>
    %72 = arith.addf %70, %71 : vector<16x32xf32>
    %73 = vector.extract_strided_slice %69 {offsets = [32, 0], sizes = [16, 32], strides = [1, 1]} : vector<64x32xf32> to vector<16x32xf32>
    %74 = arith.addf %72, %73 : vector<16x32xf32>
    %75 = vector.extract_strided_slice %69 {offsets = [48, 0], sizes = [16, 32], strides = [1, 1]} : vector<64x32xf32> to vector<16x32xf32>
    %76 = arith.addf %74, %75 : vector<16x32xf32>
    %c0_28 = arith.constant 0 : index
    %c0_29 = arith.constant 0 : index
    %77 = vector.load %arg13[%c0_28, %c0_29] : memref<32x32xf32, #tpu.memory_space<vmem>>, vector<32x32xf32>
    %cst_30 = arith.constant dense<0.000000e+00> : vector<16x32xf32>
    %78 = tpu.matmul %76, %77, %cst_30 {dimension_numbers = #tpu.dot_dimension_numbers<[1], [0], [0], [1], [0, 0, 1, 1], [], []>} : vector<16x32xf32>, vector<32x32xf32>, vector<16x32xf32> -> vector<16x32xf32>
    %c0_31 = arith.constant 0 : index
    %c0_32 = arith.constant 0 : index
    %79 = vector.load %arg14[%c0_31, %c0_32] : memref<1x32xf32, #tpu.memory_space<vmem>>, vector<1x32xf32>
    %80 = vector.broadcast %79 : vector<1x32xf32> to vector<16x32xf32>
    %81 = arith.addf %78, %80 : vector<16x32xf32>
    %c0_33 = arith.constant 0 : index
    %c0_34 = arith.constant 0 : index
    %82 = vector.load %arg9[%c0_33, %c0_34] : memref<1x32xf32, #tpu.memory_space<vmem>>, vector<1x32xf32>
    %c0_35 = arith.constant 0 : index
    %c0_36 = arith.constant 0 : index
    %83 = vector.load %arg10[%c0_35, %c0_36] : memref<1x32xf32, #tpu.memory_space<vmem>>, vector<1x32xf32>
    %cst_37 = arith.constant dense<0.000000e+00> : vector<16xf32>
    %84 = vector.multi_reduction <add>, %0, %cst_37 [1] : vector<16x32xf32> to vector<16xf32>
    %85 = vector.shape_cast %84 : vector<16xf32> to vector<16x1xf32>
    %cst_38 = arith.constant 3.200000e+01 : f32
    %86 = vector.broadcast %cst_38 : f32 to vector<16x1xf32>
    %87 = arith.divf %85, %86 : vector<16x1xf32>
    %88 = vector.broadcast %87 : vector<16x1xf32> to vector<16x32xf32>
    %89 = arith.subf %0, %88 : vector<16x32xf32>
    %90 = arith.mulf %89, %89 : vector<16x32xf32>
    %cst_39 = arith.constant dense<0.000000e+00> : vector<16xf32>
    %91 = vector.multi_reduction <add>, %90, %cst_39 [1] : vector<16x32xf32> to vector<16xf32>
    %92 = vector.shape_cast %91 : vector<16xf32> to vector<16x1xf32>
    %cst_40 = arith.constant 3.200000e+01 : f32
    %93 = vector.broadcast %cst_40 : f32 to vector<16x1xf32>
    %94 = arith.divf %92, %93 : vector<16x1xf32>
    %95 = vector.broadcast %87 : vector<16x1xf32> to vector<16x32xf32>
    %96 = arith.subf %0, %95 : vector<16x32xf32>
    %cst_41 = arith.constant 9.99999974E-6 : f32
    %97 = vector.broadcast %cst_41 : f32 to vector<16x1xf32>
    %98 = arith.addf %94, %97 : vector<16x1xf32>
    %99 = math.rsqrt %98 : vector<16x1xf32>
    %100 = vector.broadcast %99 : vector<16x1xf32> to vector<16x32xf32>
    %101 = arith.mulf %96, %100 : vector<16x32xf32>
    %102 = vector.broadcast %82 : vector<1x32xf32> to vector<16x32xf32>
    %103 = arith.mulf %101, %102 : vector<16x32xf32>
    %104 = vector.broadcast %83 : vector<1x32xf32> to vector<16x32xf32>
    %105 = arith.addf %103, %104 : vector<16x32xf32>
    %c0_42 = arith.constant 0 : index
    %c0_43 = arith.constant 0 : index
    %106 = vector.load %arg15[%c0_42, %c0_43] : memref<32x128xf32, #tpu.memory_space<vmem>>, vector<32x128xf32>
    %cst_44 = arith.constant dense<0.000000e+00> : vector<16x128xf32>
    %107 = tpu.matmul %105, %106, %cst_44 {dimension_numbers = #tpu.dot_dimension_numbers<[1], [0], [0], [1], [0, 0, 1, 1], [], []>} : vector<16x32xf32>, vector<32x128xf32>, vector<16x128xf32> -> vector<16x128xf32>
    %c0_45 = arith.constant 0 : index
    %c0_46 = arith.constant 0 : index
    %108 = vector.load %arg16[%c0_45, %c0_46] : memref<1x128xf32, #tpu.memory_space<vmem>>, vector<1x128xf32>
    %109 = vector.broadcast %108 : vector<1x128xf32> to vector<16x128xf32>
    %110 = arith.addf %107, %109 : vector<16x128xf32>
    %cst_47 = arith.constant 5.000000e-01 : f32
    %111 = vector.broadcast %cst_47 : f32 to vector<16x128xf32>
    %112 = arith.mulf %111, %110 : vector<16x128xf32>
    %cst_48 = arith.constant 4.471500e-02 : f32
    %113 = vector.broadcast %cst_48 : f32 to vector<16x128xf32>
    %114 = arith.mulf %113, %110 : vector<16x128xf32>
    %115 = arith.mulf %114, %110 : vector<16x128xf32>
    %116 = arith.mulf %115, %110 : vector<16x128xf32>
    %117 = arith.addf %110, %116 : vector<16x128xf32>
    %cst_49 = arith.constant 0.797884583 : f32
    %118 = vector.broadcast %cst_49 : f32 to vector<16x128xf32>
    %119 = arith.mulf %118, %117 : vector<16x128xf32>
    %120 = math.tanh %119 : vector<16x128xf32>
    %cst_50 = arith.constant 1.000000e+00 : f32
    %121 = vector.broadcast %cst_50 : f32 to vector<16x128xf32>
    %122 = arith.addf %121, %120 : vector<16x128xf32>
    %123 = arith.mulf %112, %122 : vector<16x128xf32>
    %c0_51 = arith.constant 0 : index
    %c0_52 = arith.constant 0 : index
    %124 = vector.load %arg17[%c0_51, %c0_52] : memref<128x32xf32, #tpu.memory_space<vmem>>, vector<128x32xf32>
    %cst_53 = arith.constant dense<0.000000e+00> : vector<16x32xf32>
    %125 = tpu.matmul %123, %124, %cst_53 {dimension_numbers = #tpu.dot_dimension_numbers<[1], [0], [0], [1], [0, 0, 1, 1], [], []>} : vector<16x128xf32>, vector<128x32xf32>, vector<16x32xf32> -> vector<16x32xf32>
    %c0_54 = arith.constant 0 : index
    %c0_55 = arith.constant 0 : index
    %126 = vector.load %arg18[%c0_54, %c0_55] : memref<1x32xf32, #tpu.memory_space<vmem>>, vector<1x32xf32>
    %127 = vector.broadcast %126 : vector<1x32xf32> to vector<16x32xf32>
    %128 = arith.addf %125, %127 : vector<16x32xf32>
    %129 = arith.addf %128, %81 : vector<16x32xf32>
    %130 = arith.addf %129, %0 : vector<16x32xf32>
    %c0_56 = arith.constant 0 : index
    %c0_57 = arith.constant 0 : index
    %131 = vector.load %arg19[%c0_56, %c0_57] : memref<16x32xf32, #tpu.memory_space<vmem>>, vector<16x32xf32>
    tpu.vector_store %arg19[%c0_56, %c0_57], %130 {strides = array<i32>} : memref<16x32xf32, #tpu.memory_space<vmem>>, vector<16x32xf32>,
    return
  }
  func.func @transform_0(%arg0: i32) -> (i32, i32) {
    %c0_i32 = arith.constant 0 : i32
    %c0_i32_0 = arith.constant 0 : i32
    %c0_i32_1 = arith.constant 0 : i32
    return %c0_i32, %c0_i32_0 : i32, i32
  }
  func.func @transform_1(%arg0: i32) -> (i32, i32) {
    %c0_i32 = arith.constant 0 : i32
    %c0_i32_0 = arith.constant 0 : i32
    %c0_i32_1 = arith.constant 0 : i32
    return %c0_i32, %c0_i32_0 : i32, i32
  }
  func.func @transform_2(%arg0: i32) -> (i32, i32) {
    %c0_i32 = arith.constant 0 : i32
    %c0_i32_0 = arith.constant 0 : i32
    %c0_i32_1 = arith.constant 0 : i32
    return %c0_i32, %c0_i32_0 : i32, i32
  }
  func.func @transform_3(%arg0: i32) -> (i32, i32) {
    %c0_i32 = arith.constant 0 : i32
    %c0_i32_0 = arith.constant 0 : i32
    %c0_i32_1 = arith.constant 0 : i32
    return %c0_i32, %c0_i32_0 : i32, i32
  }
  func.func @transform_4(%arg0: i32) -> (i32, i32) {
    %c0_i32 = arith.constant 0 : i32
    %c0_i32_0 = arith.constant 0 : i32
    %c0_i32_1 = arith.constant 0 : i32
    return %c0_i32, %c0_i32_0 : i32, i32
  }
  func.func @transform_5(%arg0: i32) -> (i32, i32) {
    %c0_i32 = arith.constant 0 : i32
    %c0_i32_0 = arith.constant 0 : i32
    %c0_i32_1 = arith.constant 0 : i32
    return %c0_i32, %c0_i32_0 : i32, i32
  }
  func.func @transform_6(%arg0: i32) -> (i32, i32) {
    %c0_i32 = arith.constant 0 : i32
    %c0_i32_0 = arith.constant 0 : i32
    %c0_i32_1 = arith.constant 0 : i32
    return %c0_i32, %c0_i32_0 : i32, i32
  }
  func.func @transform_7(%arg0: i32) -> (i32, i32) {
    %c0_i32 = arith.constant 0 : i32
    %c0_i32_0 = arith.constant 0 : i32
    %c0_i32_1 = arith.constant 0 : i32
    return %c0_i32, %c0_i32_0 : i32, i32
  }
  func.func @transform_8(%arg0: i32) -> (i32, i32) {
    %c0_i32 = arith.constant 0 : i32
    %c0_i32_0 = arith.constant 0 : i32
    %c0_i32_1 = arith.constant 0 : i32
    return %c0_i32, %c0_i32_0 : i32, i32
  }
  func.func @transform_9(%arg0: i32) -> (i32, i32) {
    %c0_i32 = arith.constant 0 : i32
    %c0_i32_0 = arith.constant 0 : i32
    %c0_i32_1 = arith.constant 0 : i32
    return %c0_i32, %c0_i32_0 : i32, i32
  }
  func.func @transform_10(%arg0: i32) -> (i32, i32) {
    %c0_i32 = arith.constant 0 : i32
    %c0_i32_0 = arith.constant 0 : i32
    %c0_i32_1 = arith.constant 0 : i32
    return %c0_i32, %c0_i32_0 : i32, i32
  }
  func.func @transform_11(%arg0: i32) -> (i32, i32) {
    %c0_i32 = arith.constant 0 : i32
    %c0_i32_0 = arith.constant 0 : i32
    %c0_i32_1 = arith.constant 0 : i32
    return %c0_i32, %c0_i32_0 : i32, i32
  }
  func.func @transform_12(%arg0: i32) -> (i32, i32) {
    %c0_i32 = arith.constant 0 : i32
    %c0_i32_0 = arith.constant 0 : i32
    %c0_i32_1 = arith.constant 0 : i32
    return %c0_i32, %c0_i32_0 : i32, i32
  }
  func.func @transform_13(%arg0: i32) -> (i32, i32) {
    %c0_i32 = arith.constant 0 : i32
    %c0_i32_0 = arith.constant 0 : i32
    %c0_i32_1 = arith.constant 0 : i32
    return %c0_i32, %c0_i32_0 : i32, i32
  }
  func.func @transform_14(%arg0: i32) -> (i32, i32) {
    %c0_i32 = arith.constant 0 : i32
    %c0_i32_0 = arith.constant 0 : i32
    %c0_i32_1 = arith.constant 0 : i32
    return %c0_i32, %c0_i32_0 : i32, i32
  }
  func.func @transform_15(%arg0: i32) -> (i32, i32) {
    %c0_i32 = arith.constant 0 : i32
    %c0_i32_0 = arith.constant 0 : i32
    %c0_i32_1 = arith.constant 0 : i32
    return %c0_i32, %c0_i32_0 : i32, i32
  }
  func.func @transform_16(%arg0: i32) -> (i32, i32) {
    %c0_i32 = arith.constant 0 : i32
    %c0_i32_0 = arith.constant 0 : i32
    %c0_i32_1 = arith.constant 0 : i32
    return %c0_i32, %c0_i32_0 : i32, i32
  }
  func.func @transform_17(%arg0: i32) -> (i32, i32) {
    %c0_i32 = arith.constant 0 : i32
    %c0_i32_0 = arith.constant 0 : i32
    %c0_i32_1 = arith.constant 0 : i32
    return %c0_i32, %c0_i32_0 : i32, i32
  }
  func.func @transform_18(%arg0: i32) -> (i32, i32) {
    %c0_i32 = arith.constant 0 : i32
    %c0_i32_0 = arith.constant 0 : i32
    %c0_i32_1 = arith.constant 0 : i32
    return %c0_i32, %c0_i32_0 : i32, i32
  }
}

</mosaic_0001>

<llo_original>
// kernel: block_forward.1
$region0: #{block_forward.1}
  #allocation0 [shape = 'u32[]', space=smem, size = 0x4, offset = 0x4, fixed_abs, tag = 'smem constant byte address 0x4 - core index']
  #allocation1 [shape = 'u32[72,128]{1,0:T(1,128)}', space=vmem, size = 0x9000, scoped, tag = 'internal scratch']
  %s0 = inlined_call_operand.vmem [shape: f32[16,32], index: 0, kind: input, shape index: {}]
  %s1 = inlined_call_operand.vmem [shape: f32[16,16], index: 1, kind: input, shape index: {}]
  %s2 = inlined_call_operand.vmem [shape: f32[16,16], index: 2, kind: input, shape index: {}]
  %s3 = inlined_call_operand.vmem [shape: f32[64,16], index: 3, kind: input, shape index: {}]
  %s4 = inlined_call_operand.vmem [shape: f32[64,32], index: 4, kind: input, shape index: {}]
  %s5 = inlined_call_operand.vmem [shape: f32[64,32], index: 5, kind: input, shape index: {}]
  %s6 = inlined_call_operand.vmem [shape: f32[1,32], index: 6, kind: input, shape index: {}]
  %s7 = inlined_call_operand.vmem [shape: f32[1,32], index: 7, kind: input, shape index: {}]
  %s8 = inlined_call_operand.vmem [shape: f32[1,32], index: 8, kind: input, shape index: {}]
  %s9 = inlined_call_operand.vmem [shape: f32[1,32], index: 9, kind: input, shape index: {}]
  %s10 = inlined_call_operand.vmem [shape: f32[32,96], index: 10, kind: input, shape index: {}]
  %s11 = inlined_call_operand.vmem [shape: f32[1,96], index: 11, kind: input, shape index: {}]
  %s12 = inlined_call_operand.vmem [shape: f32[32,32], index: 12, kind: input, shape index: {}]
  %s13 = inlined_call_operand.vmem [shape: f32[1,32], index: 13, kind: input, shape index: {}]
  %s14 = inlined_call_operand.vmem [shape: f32[32,128], index: 14, kind: input, shape index: {}]
  %s15 = inlined_call_operand.vmem [shape: f32[1,128], index: 15, kind: input, shape index: {}]
  %s16 = inlined_call_operand.vmem [shape: f32[128,32], index: 16, kind: input, shape index: {}]
  %s17 = inlined_call_operand.vmem [shape: f32[1,32], index: 17, kind: input, shape index: {}]
  %s18 = inlined_call_operand.hbm [shape: f32[16,32], index: 18, kind: output, shape index: {}]
  %s19 = sld [smem:[#allocation0]]
  $region82: #{block_forward.1} parent=0
    _
  %s21 = ssub.s32 1, %s19
  %s22 = scalar_select 0, %s21, %s19
  $region1: #{block_forward.1} parent=0
    #allocation2 [shape = 'u8[8192]{0}', space=vmem, size = 0x2000, scoped, tag = 'output window, operand 0, single buffered']
    #allocation3 [shape = 's32[1]{0}', space=sflag, size = 0x4, scoped, tag = 'scoped memory for block_forward.1']
    %23 = vsyncpa [#allocation3], 0
    // Predicated region
    $region2: #{block_forward.1} parent=1 // pred_check
      _
    $region3: #{block_forward.1} parent=1 // pred_check_branch
      %25 = sbr.rel (0) target = $region5
    $region4: #{block_forward.1} parent=1 // pred_region
      _
    $region5: #{block_forward.1} parent=1 // pred_fallthru
      _
    // Predicated region
    $region6: #{block_forward.1} parent=1 // pred_check
      _
    $region7: #{block_forward.1} parent=1 // pred_check_branch
      %27 = sbr.rel (0) target = $region9
    $region8: #{block_forward.1} parent=1 // pred_region
      _
    $region9: #{block_forward.1} parent=1 // pred_fallthru
      _
    // Predicated region
    $region10: #{block_forward.1} parent=1 // pred_check
      _
    $region11: #{block_forward.1} parent=1 // pred_check_branch
      %29 = sbr.rel (0) target = $region13
    $region12: #{block_forward.1} parent=1 // pred_region
      _
    $region13: #{block_forward.1} parent=1 // pred_fallthru
      _
    // Predicated region
    $region14: #{block_forward.1} parent=1 // pred_check
      _
    $region15: #{block_forward.1} parent=1 // pred_check_branch
      %31 = sbr.rel (0) target = $region17
    $region16: #{block_forward.1} parent=1 // pred_region
      _
    $region17: #{block_forward.1} parent=1 // pred_fallthru
      _
    // Predicated region
    $region18: #{block_forward.1} parent=1 // pred_check
      _
    $region19: #{block_forward.1} parent=1 // pred_check_branch
      %33 = sbr.rel (0) target = $region21
    $region20: #{block_forward.1} parent=1 // pred_region
      _
    $region21: #{block_forward.1} parent=1 // pred_fallthru
      _
    // Predicated region
    $region22: #{block_forward.1} parent=1 // pred_check
      _
    $region23: #{block_forward.1} parent=1 // pred_check_branch
      %35 = sbr.rel (0) target = $region25
    $region24: #{block_forward.1} parent=1 // pred_region
      _
    $region25: #{block_forward.1} parent=1 // pred_fallthru
      _
    // Predicated region
    $region26: #{block_forward.1} parent=1 // pred_check
      _
    $region27: #{block_forward.1} parent=1 // pred_check_branch
      %37 = sbr.rel (0) target = $region29
    $region28: #{block_forward.1} parent=1 // pred_region
      _
    $region29: #{block_forward.1} parent=1 // pred_fallthru
      _
    // Predicated region
    $region30: #{block_forward.1} parent=1 // pred_check
      _
    $region31: #{block_forward.1} parent=1 // pred_check_branch
      %39 = sbr.rel (0) target = $region33
    $region32: #{block_forward.1} parent=1 // pred_region
      _
    $region33: #{block_forward.1} parent=1 // pred_fallthru
      _
    // Predicated region
    $region34: #{block_forward.1} parent=1 // pred_check
      _
    $region35: #{block_forward.1} parent=1 // pred_check_branch
      %41 = sbr.rel (0) target = $region37
    $region36: #{block_forward.1} parent=1 // pred_region
      _
    $region37: #{block_forward.1} parent=1 // pred_fallthru
      _
    // Predicated region
    $region38: #{block_forward.1} parent=1 // pred_check
      _
    $region39: #{block_forward.1} parent=1 // pred_check_branch
      %43 = sbr.rel (0) target = $region41
    $region40: #{block_forward.1} parent=1 // pred_region
      _
    $region41: #{block_forward.1} parent=1 // pred_fallthru
      _
    // Predicated region
    $region42: #{block_forward.1} parent=1 // pred_check
      _
    $region43: #{block_forward.1} parent=1 // pred_check_branch
      %45 = sbr.rel (0) target = $region45
    $region44: #{block_forward.1} parent=1 // pred_region
      _
    $region45: #{block_forward.1} parent=1 // pred_fallthru
      _
    // Predicated region
    $region46: #{block_forward.1} parent=1 // pred_check
      _
    $region47: #{block_forward.1} parent=1 // pred_check_branch
      %47 = sbr.rel (0) target = $region49
    $region48: #{block_forward.1} parent=1 // pred_region
      _
    $region49: #{block_forward.1} parent=1 // pred_fallthru
      _
    // Predicated region
    $region50: #{block_forward.1} parent=1 // pred_check
      _
    $region51: #{block_forward.1} parent=1 // pred_check_branch
      %49 = sbr.rel (0) target = $region53
    $region52: #{block_forward.1} parent=1 // pred_region
      _
    $region53: #{block_forward.1} parent=1 // pred_fallthru
      _
    // Predicated region
    $region54: #{block_forward.1} parent=1 // pred_check
      _
    $region55: #{block_forward.1} parent=1 // pred_check_branch
      %51 = sbr.rel (0) target = $region57
    $region56: #{block_forward.1} parent=1 // pred_region
      _
    $region57: #{block_forward.1} parent=1 // pred_fallthru
      _
    // Predicated region
    $region58: #{block_forward.1} parent=1 // pred_check
      _
    $region59: #{block_forward.1} parent=1 // pred_check_branch
      %53 = sbr.rel (0) target = $region61
    $region60: #{block_forward.1} parent=1 // pred_region
      _
    $region61: #{block_forward.1} parent=1 // pred_fallthru
      _
    // Predicated region
    $region62: #{block_forward.1} parent=1 // pred_check
      _
    $region63: #{block_forward.1} parent=1 // pred_check_branch
      %55 = sbr.rel (0) target = $region65
    $region64: #{block_forward.1} parent=1 // pred_region
      _
    $region65: #{block_forward.1} parent=1 // pred_fallthru
      _
    // Predicated region
    $region66: #{block_forward.1} parent=1 // pred_check
      _
    $region67: #{block_forward.1} parent=1 // pred_check_branch
      %57 = sbr.rel (0) target = $region69
    $region68: #{block_forward.1} parent=1 // pred_region
      _
    $region69: #{block_forward.1} parent=1 // pred_fallthru
      _
    // Predicated region
    $region70: #{block_forward.1} parent=1 // pred_check
      _
    $region71: #{block_forward.1} parent=1 // pred_check_branch
      %59 = sbr.rel (0) target = $region73
    $region72: #{block_forward.1} parent=1 // pred_region
      _
    $region73: #{block_forward.1} parent=1 // pred_fallthru
      _
    %v60 = vld [vmem:[%s0] sm:$0xff]
    %v61 = vld [vmem:[%s0 + $0x8] sm:$0xff]
    %v62 = vld [vmem:[%s1] sm:$0xff]
    %v63 = vld [vmem:[%s1 + $0x8] sm:$0xff]
    %v64 = vld [vmem:[%s2] sm:$0xff]
    %v65 = vld [vmem:[%s2 + $0x8] sm:$0xff]
    %v66 = vld [vmem:[%s6] sm:$0x1]
    %v67 = vld [vmem:[%s7] sm:$0x1]
    %vm68 = vcmask 261120
    %v69 = vsel %vm68, %v60, 0.0
    %70 = vadd.xlane.f32.xlu0 %v69
    %v71 = vpop.xlane.xlu0 %70
    %v72 = vsel %vm68, %v61, 0.0
    %73 = vadd.xlane.f32.xlu0 %v72
    %v74 = vpop.xlane.xlu0 %73
    %v75 = vrcp.pop 32.0
    %v76 = vmul.f32 32.0, %v75
    %v77 = vsub.f32 1.0, %v76
    %v78 = vmul.f32 %v75, %v77
    %v79 = vadd.f32 %v75, %v78
    %vm80 = vweird.f32 %v75
    %v81 = vsel %vm80, %v75, %v79
    %v82 = vmul.f32 %v71, %v81
    %v83 = vmul.f32 %v74, %v81
    %v84 = vsub.f32 %v60, %v82
    %v85 = vsub.f32 %v61, %v83
    %v86 = vmul.f32 %v84, %v84
    %v87 = vmul.f32 %v85, %v85
    %v88 = vsel %vm68, %v86, 0.0
    %89 = vadd.xlane.f32.xlu0 %v88
    %v90 = vpop.xlane.xlu0 %89
    %v91 = vsel %vm68, %v87, 0.0
    %92 = vadd.xlane.f32.xlu0 %v91
    %v93 = vpop.xlane.xlu0 %92
    %v94 = vmul.f32 %v90, %v81
    %v95 = vmul.f32 %v93, %v81
    %v96 = vadd.f32 %v94, 1e-05
    %v97 = vadd.f32 %v95, 1e-05
    %v98 = vrsqrt.pop %v96
    %v99 = vmul.f32 %v98, %v96
    %v100 = vmul.f32 %v99, %v98
    %v101 = vmul.f32 0.5, %v100
    %v102 = vsub.f32 1.5, %v101
    %v103 = vmul.f32 %v98, %v102
    %vm104 = vweird.f32 %v96
    %vm105 = vweird.f32 %v98
    %vm106 = vmor %vm104, %vm105
    %v107 = vsel %vm106, %v98, %v103
    %v108 = vrsqrt.pop %v97
    %v109 = vmul.f32 %v108, %v97
    %v110 = vmul.f32 %v109, %v108
    %v111 = vmul.f32 0.5, %v110
    %v112 = vsub.f32 1.5, %v111
    %v113 = vmul.f32 %v108, %v112
    %vm114 = vweird.f32 %v97
    %vm115 = vweird.f32 %v108
    %vm116 = vmor %vm114, %vm115
    %v117 = vsel %vm116, %v108, %v113
    %v118 = vmul.f32 %v84, %v107
    %v119 = vmul.f32 %v85, %v117
    %v121 = vperm.slane %v66, 0
    %v123 = vmul.f32 %v118, %v121
    %v124 = vmul.f32 %v119, %v121
    %v126 = vperm.slane %v67, 0
    %v128 = vadd.f32 %v123, %v126
    %v129 = vadd.f32 %v124, %v126
    %v130 = vld [vmem:[%s10] sm:$0xff]
    %v131 = vld [vmem:[%s10 + $0x8] sm:$0xff]
    %v132 = vld [vmem:[%s10 + $0x10] sm:$0xff]
    %v133 = vld [vmem:[%s10 + $0x18] sm:$0xff]
    %v134 = vld [vmem:[%s11] sm:$0x1]
    %v136 = vperm.slane %v134, 0
    %v139 = vsel %vm68, %v128, 0
    %v142 = vsel %vm68, %v129, 0
    %144 = vmatpush.msra.mxu0 0.0
    %145 = vmatpush.msra.mxu0 0.0
    %146 = vmatpush.msra.mxu0 0.0
    %147 = vmatpush.msra.mxu0 0.0
    %148 = vmatpush.msra.mxu0 0.0
    %149 = vmatpush.msra.mxu0 0.0
    %150 = vmatpush.msra.mxu0 0.0
    %151 = vmatpush.msra.mxu0 0.0
    %152 = vmatpush.msra.mxu0 0.0
    %153 = vmatpush.msra.mxu0 0.0
    %154 = vmatpush.msra.mxu0 0.0
    %155 = vmatpush.msra.mxu0 0.0
    %156 = vmatpush.msra.mxu0 %v133
    %157 = vmatpush.msra.mxu0 %v132
    %158 = vmatpush.msra.mxu0 %v131
    %159 = vmatpush.msra.mxu0 %v130
    %160 = vmatmul.f32.gmra.mxu0 %v139
    %v161 = vpop.f32.mrf.mxu0
    %v162 = vadd.f32 %v136, %v161
    %163 = vmatmul.f32.gmra.mxu0 %v142
    %v164 = vpop.f32.mrf.mxu0
    %v165 = vadd.f32 %v136, %v164
    %166 = vdwg.mxu0
    %v167 = vmul.f32 %v162, %v62
    %v168 = vmul.f32 %v165, %v63
    %171 = vrot.lane.b32.xlu0 %v64, 16
    %v172 = vpop.permute.xlu0 %171
    %173 = vrot.lane.b32.xlu0 %v65, 16
    %v174 = vpop.permute.xlu0 %173
    %v177 = vmul.f32 %v162, %v172
    %v178 = vmul.f32 %v165, %v174
    %181 = vrot.lane.b32.xlu0 %v177, 112
    %v182 = vpop.permute.xlu0 %181
    %183 = vrot.lane.b32.xlu0 %v178, 112
    %v184 = vpop.permute.xlu0 %183
    %v187 = vsub.f32 %v167, %v182
    %v188 = vsub.f32 %v168, %v184
    %191 = vrot.lane.b32.xlu0 %v62, 16
    %v192 = vpop.permute.xlu0 %191
    %193 = vrot.lane.b32.xlu0 %v63, 16
    %v194 = vpop.permute.xlu0 %193
    %v197 = vmul.f32 %v162, %v192
    %v198 = vmul.f32 %v165, %v194
    %v199 = vmul.f32 %v162, %v64
    %v200 = vmul.f32 %v165, %v65
    %203 = vrot.lane.b32.xlu0 %v199, 16
    %v204 = vpop.permute.xlu0 %203
    %205 = vrot.lane.b32.xlu0 %v200, 16
    %v206 = vpop.permute.xlu0 %205
    %v209 = vadd.f32 %v197, %v204
    %v210 = vadd.f32 %v198, %v206
    %211 = vrot.lane.b32.xlu0 %v62, 32
    %v212 = vpop.permute.xlu0 %211
    %213 = vrot.lane.b32.xlu0 %v63, 32
    %v214 = vpop.permute.xlu0 %213
    %v217 = vmul.f32 %v162, %v212
    %v218 = vmul.f32 %v165, %v214
    %219 = vrot.lane.b32.xlu0 %v64, 48
    %v220 = vpop.permute.xlu0 %219
    %221 = vrot.lane.b32.xlu0 %v65, 48
    %v222 = vpop.permute.xlu0 %221
    %v225 = vmul.f32 %v162, %v220
    %v226 = vmul.f32 %v165, %v222
    %229 = vrot.lane.b32.xlu0 %v225, 112
    %v230 = vpop.permute.xlu0 %229
    %231 = vrot.lane.b32.xlu0 %v226, 112
    %v232 = vpop.permute.xlu0 %231
    %v235 = vsub.f32 %v217, %v230
    %v236 = vsub.f32 %v218, %v232
    %237 = vrot.lane.b32.xlu0 %v62, 48
    %v238 = vpop.permute.xlu0 %237
    %239 = vrot.lane.b32.xlu0 %v63, 48
    %v240 = vpop.permute.xlu0 %239
    %v243 = vmul.f32 %v162, %v238
    %v244 = vmul.f32 %v165, %v240
    %245 = vrot.lane.b32.xlu0 %v64, 32
    %v246 = vpop.permute.xlu0 %245
    %247 = vrot.lane.b32.xlu0 %v65, 32
    %v248 = vpop.permute.xlu0 %247
    %v251 = vmul.f32 %v162, %v246
    %v252 = vmul.f32 %v165, %v248
    %255 = vrot.lane.b32.xlu0 %v251, 16
    %v256 = vpop.permute.xlu0 %255
    %257 = vrot.lane.b32.xlu0 %v252, 16
    %v258 = vpop.permute.xlu0 %257
    %v261 = vadd.f32 %v243, %v256
    %v262 = vadd.f32 %v244, %v258
    %vm263 = vcmask 130048
    %v264 = vsel %vm263, %v187, %v209
    %v265 = vsel %vm263, %v188, %v210
    %268 = vrot.lane.b32.xlu0 %v235, 96
    %v269 = vpop.permute.xlu0 %268
    %270 = vrot.lane.b32.xlu0 %v236, 96
    %v271 = vpop.permute.xlu0 %270
    %276 = vrot.lane.b32.xlu0 %v261, 96
    %v277 = vpop.permute.xlu0 %276
    %278 = vrot.lane.b32.xlu0 %v262, 96
    %v279 = vpop.permute.xlu0 %278
    %v282 = vsel %vm263, %v269, %v277
    %v283 = vsel %vm263, %v271, %v279
    %v284 = vld [vmem:[%s4] sm:$0xff]
    %v285 = vld [vmem:[%s4 + $0x8] sm:$0xff]
    %v286 = vld [vmem:[%s4 + $0x10] sm:$0xff]
    %v287 = vld [vmem:[%s4 + $0x18] sm:$0xff]
    %v288 = vld [vmem:[%s4 + $0x20] sm:$0xff]
    %v289 = vld [vmem:[%s4 + $0x28] sm:$0xff]
    %v290 = vld [vmem:[%s4 + $0x30] sm:$0xff]
    %v291 = vld [vmem:[%s4 + $0x38] sm:$0xff]
    %v292 = vmul.f32 %v264, %v284
    %v293 = vmul.f32 %v265, %v285
    %v294 = vmul.f32 %v264, %v286
    %v295 = vmul.f32 %v265, %v287
    %v296 = vmul.f32 %v264, %v288
    %v297 = vmul.f32 %v265, %v289
    %v298 = vmul.f32 %v264, %v290
    %v299 = vmul.f32 %v265, %v291
    %v300 = vld [vmem:[%s3] sm:$0xff]
    %v301 = vld [vmem:[%s3 + $0x8] sm:$0xff]
    %v302 = vld [vmem:[%s3 + $0x10] sm:$0xff]
    %v303 = vld [vmem:[%s3 + $0x18] sm:$0xff]
    %v304 = vld [vmem:[%s3 + $0x20] sm:$0xff]
    %v305 = vld [vmem:[%s3 + $0x28] sm:$0xff]
    %v306 = vld [vmem:[%s3 + $0x30] sm:$0xff]
    %v307 = vld [vmem:[%s3 + $0x38] sm:$0xff]
    %v309 = vsel %vm68, %v292, 0
    %v312 = vsel %vm68, %v293, 0
    %v315 = vsel %vm68, %v294, 0
    %v318 = vsel %vm68, %v295, 0
    %v321 = vsel %vm68, %v296, 0
    %v324 = vsel %vm68, %v297, 0
    %v327 = vsel %vm68, %v298, 0
    %v330 = vsel %vm68, %v299, 0
    %v333 = vsel %vm68, %v282, 0
    %v336 = vsel %vm68, %v283, 0
    %338 = vmatpush.xpose.msra.mxu0 0.0
    %339 = vmatpush.xpose.msra.mxu0 0.0
    %340 = vmatpush.xpose.msra.mxu0 0.0
    %341 = vmatpush.xpose.msra.mxu0 0.0
    %342 = vmatpush.xpose.msra.mxu0 0.0
    %343 = vmatpush.xpose.msra.mxu0 0.0
    %344 = vmatpush.xpose.msra.mxu0 0.0
    %345 = vmatpush.xpose.msra.mxu0 0.0
    %346 = vmatpush.xpose.msra.mxu0 0.0
    %347 = vmatpush.xpose.msra.mxu0 0.0
    %348 = vmatpush.xpose.msra.mxu0 0.0
    %349 = vmatpush.xpose.msra.mxu0 0.0
    %350 = vmatpush.xpose.msra.mxu0 0.0
    %351 = vmatpush.xpose.msra.mxu0 0.0
    %352 = vmatpush.xpose.msra.mxu0 %v336
    %353 = vmatpush.xpose.msra.mxu0 %v333
    %354 = vmatmul.f32.gmra.mxu0 %v309
    %v355 = vpop.f32.mrf.mxu0
    %v356 = vadd.f32 %v300, %v355
    %357 = vmatmul.f32.gmra.mxu0 %v312
    %v358 = vpop.f32.mrf.mxu0
    %v359 = vadd.f32 %v301, %v358
    %360 = vmatmul.f32.gmra.mxu0 %v315
    %v361 = vpop.f32.mrf.mxu0
    %v362 = vadd.f32 %v302, %v361
    %363 = vmatmul.f32.gmra.mxu0 %v318
    %v364 = vpop.f32.mrf.mxu0
    %v365 = vadd.f32 %v303, %v364
    %366 = vmatmul.f32.gmra.mxu0 %v321
    %v367 = vpop.f32.mrf.mxu0
    %v368 = vadd.f32 %v304, %v367
    %369 = vmatmul.f32.gmra.mxu0 %v324
    %v370 = vpop.f32.mrf.mxu0
    %v371 = vadd.f32 %v305, %v370
    %372 = vmatmul.f32.gmra.mxu0 %v327
    %v373 = vpop.f32.mrf.mxu0
    %v374 = vadd.f32 %v306, %v373
    %375 = vmatmul.f32.gmra.mxu0 %v330
    %v376 = vpop.f32.mrf.mxu0
    %v377 = vadd.f32 %v307, %v376
    %378 = vdwg.mxu0
    %v379 = vsel %vm263, %v356, -inf
    %380 = vmax.xlane.f32.xlu0 %v379
    %v381 = vpop.xlane.xlu0 %380
    %v382 = vsel %vm263, %v359, -inf
    %383 = vmax.xlane.f32.xlu0 %v382
    %v384 = vpop.xlane.xlu0 %383
    %v385 = vsel %vm263, %v362, -inf
    %386 = vmax.xlane.f32.xlu0 %v385
    %v387 = vpop.xlane.xlu0 %386
    %v388 = vsel %vm263, %v365, -inf
    %389 = vmax.xlane.f32.xlu0 %v388
    %v390 = vpop.xlane.xlu0 %389
    %v391 = vsel %vm263, %v368, -inf
    %392 = vmax.xlane.f32.xlu0 %v391
    %v393 = vpop.xlane.xlu0 %392
    %v394 = vsel %vm263, %v371, -inf
    %395 = vmax.xlane.f32.xlu0 %v394
    %v396 = vpop.xlane.xlu0 %395
    %v397 = vsel %vm263, %v374, -inf
    %398 = vmax.xlane.f32.xlu0 %v397
    %v399 = vpop.xlane.xlu0 %398
    %v400 = vsel %vm263, %v377, -inf
    %401 = vmax.xlane.f32.xlu0 %v400
    %v402 = vpop.xlane.xlu0 %401
    %v403 = vsub.f32 %v356, %v381
    %v404 = vsub.f32 %v359, %v384
    %v405 = vsub.f32 %v362, %v387
    %v406 = vsub.f32 %v365, %v390
    %v407 = vsub.f32 %v368, %v393
    %v408 = vsub.f32 %v371, %v396
    %v409 = vsub.f32 %v374, %v399
    %v410 = vsub.f32 %v377, %v402
    %v411 = vmul.f32 %v403, 1.442695
    %v412 = vpow.pop %v411
    %v413 = vmul.f32 %v404, 1.442695
    %v414 = vpow.pop %v413
    %v415 = vmul.f32 %v405, 1.442695
    %v416 = vpow.pop %v415
    %v417 = vmul.f32 %v406, 1.442695
    %v418 = vpow.pop %v417
    %v419 = vmul.f32 %v407, 1.442695
    %v420 = vpow.pop %v419
    %v421 = vmul.f32 %v408, 1.442695
    %v422 = vpow.pop %v421
    %v423 = vmul.f32 %v409, 1.442695
    %v424 = vpow.pop %v423
    %v425 = vmul.f32 %v410, 1.442695
    %v426 = vpow.pop %v425
    %v427 = vsel %vm263, %v412, 0.0
    %428 = vadd.xlane.f32.xlu0 %v427
    %v429 = vpop.xlane.xlu0 %428
    %v430 = vsel %vm263, %v414, 0.0
    %431 = vadd.xlane.f32.xlu0 %v430
    %v432 = vpop.xlane.xlu0 %431
    %v433 = vsel %vm263, %v416, 0.0
    %434 = vadd.xlane.f32.xlu0 %v433
    %v435 = vpop.xlane.xlu0 %434
    %v436 = vsel %vm263, %v418, 0.0
    %437 = vadd.xlane.f32.xlu0 %v436
    %v438 = vpop.xlane.xlu0 %437
    %v439 = vsel %vm263, %v420, 0.0
    %440 = vadd.xlane.f32.xlu0 %v439
    %v441 = vpop.xlane.xlu0 %440
    %v442 = vsel %vm263, %v422, 0.0
    %443 = vadd.xlane.f32.xlu0 %v442
    %v444 = vpop.xlane.xlu0 %443
    %v445 = vsel %vm263, %v424, 0.0
    %446 = vadd.xlane.f32.xlu0 %v445
    %v447 = vpop.xlane.xlu0 %446
    %v448 = vsel %vm263, %v426, 0.0
    %449 = vadd.xlane.f32.xlu0 %v448
    %v450 = vpop.xlane.xlu0 %449
    %v451 = vrcp.pop %v429
    %v452 = vrcp.pop %v432
    %v453 = vrcp.pop %v435
    %v454 = vrcp.pop %v438
    %v455 = vrcp.pop %v441
    %v456 = vrcp.pop %v444
    %v457 = vrcp.pop %v447
    %v458 = vrcp.pop %v450
    %v459 = vmul.f32 %v412, %v451
    %v460 = vmul.f32 %v414, %v452
    %v461 = vmul.f32 %v416, %v453
    %v462 = vmul.f32 %v418, %v454
    %v463 = vmul.f32 %v420, %v455
    %v464 = vmul.f32 %v422, %v456
    %v465 = vmul.f32 %v424, %v457
    %v466 = vmul.f32 %v426, %v458
    %469 = vrot.lane.b32.xlu0 %v162, 64
    %v470 = vpop.permute.xlu0 %469
    %471 = vrot.lane.b32.xlu0 %v165, 64
    %v472 = vpop.permute.xlu0 %471
    %v476 = vsel %vm263, %v459, 0
    %v479 = vsel %vm263, %v460, 0
    %v482 = vsel %vm263, %v461, 0
    %v485 = vsel %vm263, %v462, 0
    %v488 = vsel %vm263, %v463, 0
    %v491 = vsel %vm263, %v464, 0
    %v494 = vsel %vm263, %v465, 0
    %v497 = vsel %vm263, %v466, 0
    %499 = vmatpush.msra.mxu0 0.0
    %500 = vmatpush.msra.mxu0 0.0
    %501 = vmatpush.msra.mxu0 0.0
    %502 = vmatpush.msra.mxu0 0.0
    %503 = vmatpush.msra.mxu0 0.0
    %504 = vmatpush.msra.mxu0 0.0
    %505 = vmatpush.msra.mxu0 0.0
    %506 = vmatpush.msra.mxu0 0.0
    %507 = vmatpush.msra.mxu0 0.0
    %508 = vmatpush.msra.mxu0 0.0
    %509 = vmatpush.msra.mxu0 0.0
    %510 = vmatpush.msra.mxu0 0.0
    %511 = vmatpush.msra.mxu0 0.0
    %512 = vmatpush.msra.mxu0 0.0
    %513 = vmatpush.msra.mxu0 %v472
    %514 = vmatpush.msra.mxu0 %v470
    %515 = vmatmul.f32.gmra.mxu0 %v476
    %v516 = vpop.f32.mrf.mxu0
    %v517 = vadd.f32 0.0, %v516
    %518 = vmatmul.f32.gmra.mxu0 %v479
    %v519 = vpop.f32.mrf.mxu0
    %v520 = vadd.f32 0.0, %v519
    %521 = vmatmul.f32.gmra.mxu0 %v482
    %v522 = vpop.f32.mrf.mxu0
    %v523 = vadd.f32 0.0, %v522
    %524 = vmatmul.f32.gmra.mxu0 %v485
    %v525 = vpop.f32.mrf.mxu0
    %v526 = vadd.f32 0.0, %v525
    %527 = vmatmul.f32.gmra.mxu0 %v488
    %v528 = vpop.f32.mrf.mxu0
    %v529 = vadd.f32 0.0, %v528
    %530 = vmatmul.f32.gmra.mxu0 %v491
    %v531 = vpop.f32.mrf.mxu0
    %v532 = vadd.f32 0.0, %v531
    %533 = vmatmul.f32.gmra.mxu0 %v494
    %v534 = vpop.f32.mrf.mxu0
    %v535 = vadd.f32 0.0, %v534
    %536 = vmatmul.f32.gmra.mxu0 %v497
    %v537 = vpop.f32.mrf.mxu0
    %v538 = vadd.f32 0.0, %v537
    %539 = vdwg.mxu0
    %v540 = vld [vmem:[%s5] sm:$0xff]
    %v541 = vld [vmem:[%s5 + $0x8] sm:$0xff]
    %v542 = vld [vmem:[%s5 + $0x10] sm:$0xff]
    %v543 = vld [vmem:[%s5 + $0x18] sm:$0xff]
    %v544 = vld [vmem:[%s5 + $0x20] sm:$0xff]
    %v545 = vld [vmem:[%s5 + $0x28] sm:$0xff]
    %v546 = vld [vmem:[%s5 + $0x30] sm:$0xff]
    %v547 = vld [vmem:[%s5 + $0x38] sm:$0xff]
    %v548 = vmul.f32 %v517, %v540
    %v549 = vmul.f32 %v520, %v541
    %v550 = vmul.f32 %v523, %v542
    %v551 = vmul.f32 %v526, %v543
    %v552 = vmul.f32 %v529, %v544
    %v553 = vmul.f32 %v532, %v545
    %v554 = vmul.f32 %v535, %v546
    %v555 = vmul.f32 %v538, %v547
    %v556 = vadd.f32 %v548, %v550
    %v557 = vadd.f32 %v549, %v551
    %v558 = vadd.f32 %v556, %v552
    %v559 = vadd.f32 %v557, %v553
    %v560 = vadd.f32 %v558, %v554
    %v561 = vadd.f32 %v559, %v555
    %v562 = vld [vmem:[%s12] sm:$0xff]
    %v563 = vld [vmem:[%s12 + $0x8] sm:$0xff]
    %v564 = vld [vmem:[%s12 + $0x10] sm:$0xff]
    %v565 = vld [vmem:[%s12 + $0x18] sm:$0xff]
    %v566 = vld [vmem:[%s13] sm:$0x1]
    %v568 = vperm.slane %v566, 0
    %v571 = vsel %vm68, %v560, 0
    %v574 = vsel %vm68, %v561, 0
    %576 = vmatpush.msra.mxu0 0.0
    %577 = vmatpush.msra.mxu0 0.0
    %578 = vmatpush.msra.mxu0 0.0
    %579 = vmatpush.msra.mxu0 0.0
    %580 = vmatpush.msra.mxu0 0.0
    %581 = vmatpush.msra.mxu0 0.0
    %582 = vmatpush.msra.mxu0 0.0
    %583 = vmatpush.msra.mxu0 0.0
    %584 = vmatpush.msra.mxu0 0.0
    %585 = vmatpush.msra.mxu0 0.0
    %586 = vmatpush.msra.mxu0 0.0
    %587 = vmatpush.msra.mxu0 0.0
    %588 = vmatpush.msra.mxu0 %v565
    %589 = vmatpush.msra.mxu0 %v564
    %590 = vmatpush.msra.mxu0 %v563
    %591 = vmatpush.msra.mxu0 %v562
    %592 = vmatmul.f32.gmra.mxu0 %v571
    %v593 = vpop.f32.mrf.mxu0
    %v594 = vadd.f32 %v568, %v593
    %595 = vmatmul.f32.gmra.mxu0 %v574
    %v596 = vpop.f32.mrf.mxu0
    %v597 = vadd.f32 %v568, %v596
    %598 = vdwg.mxu0
    %v599 = vld [vmem:[%s8] sm:$0x1]
    %v600 = vld [vmem:[%s9] sm:$0x1]
    %v602 = vperm.slane %v599, 0
    %v604 = vmul.f32 %v118, %v602
    %v605 = vmul.f32 %v119, %v602
    %v607 = vperm.slane %v600, 0
    %v609 = vadd.f32 %v604, %v607
    %v610 = vadd.f32 %v605, %v607
    %v611 = vld [vmem:[%s14] sm:$0xff]
    %v612 = vld [vmem:[%s14 + $0x8] sm:$0xff]
    %v613 = vld [vmem:[%s14 + $0x10] sm:$0xff]
    %v614 = vld [vmem:[%s14 + $0x18] sm:$0xff]
    %v615 = vld [vmem:[%s15] sm:$0x1]
    %v617 = vperm.slane %v615, 0
    %v620 = vsel %vm68, %v609, 0
    %v623 = vsel %vm68, %v610, 0
    %625 = vmatpush.msra.mxu0 0.0
    %626 = vmatpush.msra.mxu0 0.0
    %627 = vmatpush.msra.mxu0 0.0
    %628 = vmatpush.msra.mxu0 0.0
    %629 = vmatpush.msra.mxu0 0.0
    %630 = vmatpush.msra.mxu0 0.0
    %631 = vmatpush.msra.mxu0 0.0
    %632 = vmatpush.msra.mxu0 0.0
    %633 = vmatpush.msra.mxu0 0.0
    %634 = vmatpush.msra.mxu0 0.0
    %635 = vmatpush.msra.mxu0 0.0
    %636 = vmatpush.msra.mxu0 0.0
    %637 = vmatpush.msra.mxu0 %v614
    %638 = vmatpush.msra.mxu0 %v613
    %639 = vmatpush.msra.mxu0 %v612
    %640 = vmatpush.msra.mxu0 %v611
    %641 = vmatmul.f32.gmra.mxu0 %v620
    %v642 = vpop.f32.mrf.mxu0
    %v643 = vadd.f32 %v617, %v642
    %644 = vmatmul.f32.gmra.mxu0 %v623
    %v645 = vpop.f32.mrf.mxu0
    %v646 = vadd.f32 %v617, %v645
    %647 = vdwg.mxu0
    %v648 = vmul.f32 %v643, 0.5
    %v649 = vmul.f32 %v646, 0.5
    %v650 = vmul.f32 %v643, 0.044715
    %v651 = vmul.f32 %v646, 0.044715
    %v652 = vmul.f32 %v650, %v643
    %v653 = vmul.f32 %v651, %v646
    %v654 = vmul.f32 %v652, %v643
    %v655 = vmul.f32 %v653, %v646
    %v656 = vadd.f32 %v643, %v654
    %v657 = vadd.f32 %v646, %v655
    %v658 = vmul.f32 %v656, 0.7978846
    %v659 = vmul.f32 %v657, 0.7978846
    %v660 = vtanh.pop %v658
    %v661 = vtanh.pop %v659
    %v662 = vadd.f32 %v660, 1.0
    %v663 = vadd.f32 %v661, 1.0
    %v664 = vmul.f32 %v648, %v662
    %v665 = vmul.f32 %v649, %v663
    %v666 = vld [vmem:[%s16] sm:$0xff]
    %v667 = vld [vmem:[%s16 + $0x8] sm:$0xff]
    %v668 = vld [vmem:[%s16 + $0x10] sm:$0xff]
    %v669 = vld [vmem:[%s16 + $0x18] sm:$0xff]
    %v670 = vld [vmem:[%s16 + $0x20] sm:$0xff]
    %v671 = vld [vmem:[%s16 + $0x28] sm:$0xff]
    %v672 = vld [vmem:[%s16 + $0x30] sm:$0xff]
    %v673 = vld [vmem:[%s16 + $0x38] sm:$0xff]
    %v674 = vld [vmem:[%s16 + $0x40] sm:$0xff]
    %v675 = vld [vmem:[%s16 + $0x48] sm:$0xff]
    %v676 = vld [vmem:[%s16 + $0x50] sm:$0xff]
    %v677 = vld [vmem:[%s16 + $0x58] sm:$0xff]
    %v678 = vld [vmem:[%s16 + $0x60] sm:$0xff]
    %v679 = vld [vmem:[%s16 + $0x68] sm:$0xff]
    %v680 = vld [vmem:[%s16 + $0x70] sm:$0xff]
    %v681 = vld [vmem:[%s16 + $0x78] sm:$0xff]
    %v682 = vld [vmem:[%s17] sm:$0x1]
    %v684 = vperm.slane %v682, 0
    %686 = vmatpush.msra.mxu0 %v681
    %687 = vmatpush.msra.mxu0 %v680
    %688 = vmatpush.msra.mxu0 %v679
    %689 = vmatpush.msra.mxu0 %v678
    %690 = vmatpush.msra.mxu0 %v677
    %691 = vmatpush.msra.mxu0 %v676
    %692 = vmatpush.msra.mxu0 %v675
    %693 = vmatpush.msra.mxu0 %v674
    %694 = vmatpush.msra.mxu0 %v673
    %695 = vmatpush.msra.mxu0 %v672
    %696 = vmatpush.msra.mxu0 %v671
    %697 = vmatpush.msra.mxu0 %v670
    %698 = vmatpush.msra.mxu0 %v669
    %699 = vmatpush.msra.mxu0 %v668
    %700 = vmatpush.msra.mxu0 %v667
    %701 = vmatpush.msra.mxu0 %v666
    %702 = vmatmul.f32.gmra.mxu0 %v664
    %v703 = vpop.f32.mrf.mxu0
    %v704 = vadd.f32 %v684, %v703
    %705 = vmatmul.f32.gmra.mxu0 %v665
    %v706 = vpop.f32.mrf.mxu0
    %v707 = vadd.f32 %v684, %v706
    %708 = vdwg.mxu0
    %v709 = vadd.f32 %v704, %v594
    %v710 = vadd.f32 %v707, %v597
    %v711 = vadd.f32 %v709, %v60
    %v712 = vadd.f32 %v710, %v61
    %713 = vst.msk [vmem:[#allocation2] sm:$0xff] %vm68, %v711
    %714 = vst.msk [vmem:[#allocation2 + $0x8] sm:$0xff] %vm68, %v712
    // Predicated region
    $region74: #{block_forward.1} parent=1 // pred_check
      _
    $region75: #{block_forward.1} parent=1 // pred_check_branch
      %716 = sbr.rel (0) target = $region77
    $region76: #{block_forward.1} parent=1 // pred_region
      %718 = vsyncadd [#allocation3], 0
      %s719 = sshll.u32 [#allocation2], 4
      %s720 = int_to_ptr.vmem [resolvable:$true] %s719
      %s721 = sshll.u32 %s18, 4
      %s722 = int_to_ptr.hbm [resolvable:$true] %s721
      %727 = dma.vmem_to_hbm [thread:$0]  %s720, 256, %s722, [#allocation3], 128, 128, 8
    $region77: #{block_forward.1} parent=1 // pred_fallthru
      _
    // Predicated region
    $region78: #{block_forward.1} parent=1 // pred_check
      _
    $region79: #{block_forward.1} parent=1 // pred_check_branch
      %729 = sbr.rel (0) target = $region81
    $region80: #{block_forward.1} parent=1 // pred_region
      %731 = dma.done [#allocation3], 256
    $region81: #{block_forward.1} parent=1 // pred_fallthru
      _
    %732 = vsyncpa [#allocation3], 1

</llo_original>
